<compile_context>
chip_gen: v6e
topology: v6e:2x2x1
jax: 0.10.0
libtpu: 0.0.40
codegen_flags: <defaults>
</compile_context>

<pallas_src>
import math

import jax
import jax.numpy as jnp
import numpy as np
from jax.experimental import pallas as pl
from jax.experimental.pallas import tpu as pltpu

# ----------------------------- configuration -------------------------------
B = 8        # batch size
D_IN = 16    # input feature dim (obs_size)
H = 32       # encoder hidden dim
L = 16       # latent_dim
K = 3        # number of output heads / flows (n_actions)

LOG_2PI = math.log(2.0 * math.pi)
# EvidenceScaler(latent_dim, 'normal'): log_scale = 0.5 * dim * log(4*pi)
LOG_BUDGET = 0.5 * L * math.log(4.0 * math.pi)
# Conjugate prior of the Normal output head (expected sufficient stats, evidence)
PRIOR_S0 = 0.0
PRIOR_S1 = 1.0
PRIOR_EVIDENCE = 1.0
LOG_PRIOR_EV = math.log(PRIOR_EVIDENCE)

PW = max(H, L, 3 * K)   # lane width of the packed small-parameter array (=32)


# -------------------------------- kernel -----------------------------------
def natpn_kernel(x_ref, w1_ref, w2_ref, wc_ref, p_ref, out_ref):
    # packed small params: row0=b1, row1=b2, row2=[bloc|blogp|0], row3=alpha,
    # row4=beta, row5=|z0|^2 per head
    b1 = p_ref[0:1, 0:H]            # (1, H)
    b2 = p_ref[1:2, 0:L]            # (1, L)
    bc = p_ref[2:3, 0:3 * K]        # (1, 3K)
    alpha = p_ref[3:4, 0:K]         # (1, K)
    beta = p_ref[4:5, 0:K]          # (1, K)
    z0sq = p_ref[5:6, 0:K]          # (1, K)

    x = x_ref[...]                                                   # (B, D_IN)

    # ---- encoder MLP:  z = W2 @ relu(W1 @ x + b1) + b2 ----
    h = jnp.dot(x, w1_ref[...], preferred_element_type=jnp.float32) + b1
    h = jnp.maximum(h, 0.0)                                          # (B, H)
    z = jnp.dot(h, w2_ref[...], preferred_element_type=jnp.float32) + b2  # (B, L)

    # ---- fused heads + flow projection: [loc | log_prec | z @ z0^T] ----
    head = jnp.dot(z, wc_ref[...], preferred_element_type=jnp.float32) + bc  # (B, 3K)
    loc = head[:, 0:K]                                               # (B, K)
    log_prec = head[:, K:2 * K]                                      # (B, K)
    zdot = head[:, 2 * K:3 * K]                                      # (B, K) = z . z0_k

    s0 = loc                                                         # E[x]
    s1 = loc * loc + jnp.exp(-log_prec)                              # E[x^2] = mu^2 + var

    # ---- vectorized radial flows (single layer), standard-normal base ----
    zz = jnp.sum(z * z, axis=-1, keepdims=True)                      # (B, 1)
    r2 = jnp.maximum(zz - 2.0 * zdot + z0sq, 0.0)                    # (B, K) = |z - z0_k|^2
    r = jnp.sqrt(r2 + 1e-12)                                         # (B, K)
    hc = 1.0 / (alpha + r)                                           # (B, K)
    bh = beta * hc                                                   # (B, K)
    # |f(z)|^2 = |z|^2 + 2*bh*(z.(z - z0)) + bh^2*|z - z0|^2
    sq = zz + 2.0 * bh * (zz - zdot) + bh * bh * r2                  # (B, K)
    # |det J| of the radial flow; second log1p argument is > 0 by the
    # beta >= -alpha construction of the flow parameters.
    log_det = (L - 1) * jnp.log1p(bh) + jnp.log1p(bh - beta * r * hc * hc)
    log_prob = -0.5 * sq - 0.5 * L * LOG_2PI + log_det               # (B, K)

    # ---- evidence scaling + stable conjugate (Normal) prior update ----
    le = log_prob + LOG_BUDGET - LOG_PRIOR_EV
    sig_pos = 1.0 / (1.0 + jnp.exp(-le))    # evidence / (prior_ev + evidence)
    sig_neg = 1.0 / (1.0 + jnp.exp(le))     # prior_ev / (prior_ev + evidence)
    # log(prior_ev + evidence) via a stable softplus
    logev = LOG_PRIOR_EV + jnp.maximum(le, 0.0) + jnp.log1p(jnp.exp(-jnp.abs(le)))

    # single lane-packed output slab: [stat0 | stat1 | log_evidence | log_prob]
    out_ref[:, 0:K] = PRIOR_S0 * sig_neg + s0 * sig_pos
    out_ref[:, K:2 * K] = PRIOR_S1 * sig_neg + s1 * sig_pos
    out_ref[:, 2 * K:3 * K] = logev
    out_ref[:, 3 * K:4 * K] = log_prob


# ------------------------------- wrapper ------------------------------------
def _pack_params(params):
    """Pack the 10 raw parameter arrays into 4 kernel inputs.

    In deployment this packing is done once at parameter-load time; it is kept
    in the (jitted) wrapper here only so the script stays self-contained.
    """
    w1, b1, w2, b2, wloc, bloc, wlogp, blogp, z0, ab = params
    # fused head + flow-projection weight: [wloc | wlogp | z0^T]  -> (L, 3K)
    wcomb = jnp.concatenate([wloc, wlogp, z0.T], axis=1).astype(jnp.float32)
    bcomb = jnp.concatenate([bloc, blogp, jnp.zeros((1, K), jnp.float32)], axis=1)

    alpha = ab[:, 0][None, :]                       # (1, K)
    beta = ab[:, 1][None, :]                        # (1, K)
    z0sq = jnp.sum(z0 * z0, axis=1)[None, :]        # (1, K)

    def row(v):
        return jnp.pad(v, ((0, 0), (0, PW - v.shape[1])))

    pvec = jnp.concatenate(
        [row(b1), row(b2), row(bcomb), row(alpha), row(beta), row(z0sq)],
        axis=0).astype(jnp.float32)                 # (6, PW)
    return w1, w2, wcomb, pvec


@jax.jit
def natpn_forward(x, params):
    w1, w2, wcomb, pvec = _pack_params(params)

    vmem = pl.BlockSpec(memory_space=pltpu.MemorySpace.VMEM)

    packed = pl.pallas_call(
        natpn_kernel,
        out_shape=jax.ShapeDtypeStruct((B, 4 * K), jnp.float32),
        in_specs=[vmem] * 5,
        out_specs=vmem,
    )(x, w1, w2, wcomb, pvec)

    stat0 = packed[:, 0:K]
    stat1 = packed[:, K:2 * K]
    post_log_ev = packed[:, 2 * K:3 * K]
    log_prob = packed[:, 3 * K:4 * K]

    # Posterior object equivalent: (sufficient_statistics, log_evidence), log_prob
    post_stats = jnp.stack([stat0, stat1], axis=-1)                  # (B, K, 2)
    return post_stats, post_log_ev, log_prob
    # TODO(synk): the task_indices gather path, the torch.distributions
    # Posterior wrapper class, and flow_length>1 stacked radial layers have no
    # kernel equivalent here; a single radial layer per head and raw tensors
    # are returned.


# ---------------------------- pure-JAX reference ----------------------------
def natpn_reference(x, params):
    (w1, b1, w2, b2, wloc, bloc, wlogp, blogp, z0, ab) = params
    h = jnp.maximum(x @ w1 + b1, 0.0)
    z = h @ w2 + b2
    loc = z @ wloc + bloc
    log_prec = z @ wlogp + blogp
    s0 = loc
    s1 = loc * loc + jnp.exp(-log_prec)

    lp_cols = []
    for k in range(K):
        alpha = ab[k, 0]
        beta = ab[k, 1]
        diff = z - z0[k:k + 1, :]
        r = jnp.sqrt(jnp.sum(diff * diff, axis=-1, keepdims=True) + 1e-12)
        hc = 1.0 / (alpha + r)
        bh = beta * hc
        fz = z + bh * diff
        sq = jnp.sum(fz * fz, axis=-1, keepdims=True)
        log_det = (L - 1) * jnp.log(1.0 + bh) + jnp.log(1.0 + bh - beta * r * hc * hc)
        lp_cols.append(-0.5 * sq - 0.5 * L * LOG_2PI + log_det)
    log_prob = jnp.concatenate(lp_cols, axis=1)

    log_evidence = log_prob + LOG_BUDGET
    evidence = jnp.exp(log_evidence)
    total = PRIOR_EVIDENCE + evidence
    post_s0 = (PRIOR_EVIDENCE * PRIOR_S0 + evidence * s0) / total
    post_s1 = (PRIOR_EVIDENCE * PRIOR_S1 + evidence * s1) / total
    return jnp.stack([post_s0, post_s1], axis=-1), jnp.log(total), log_prob


# --------------------------------- main --------------------------------------
if __name__ == "__main__":
    key = jax.random.PRNGKey(0)
    ks = jax.random.split(key, 12)

    x = jax.random.normal(ks[0], (B, D_IN), jnp.float32)

    w1 = 0.2 * jax.random.normal(ks[1], (D_IN, H), jnp.float32)
    b1 = 0.1 * jax.random.normal(ks[2], (1, H), jnp.float32)
    w2 = 0.2 * jax.random.normal(ks[3], (H, L), jnp.float32)
    b2 = 0.1 * jax.random.normal(ks[4], (1, L), jnp.float32)
    wloc = 0.2 * jax.random.normal(ks[5], (L, K), jnp.float32)
    bloc = 0.1 * jax.random.normal(ks[6], (1, K), jnp.float32)
    wlogp = 0.2 * jax.random.normal(ks[7], (L, K), jnp.float32)
    blogp = 0.1 * jax.random.normal(ks[8], (1, K), jnp.float32)

    z0 = 0.5 * jax.random.normal(ks[9], (K, L), jnp.float32)
    raw_alpha = jax.random.normal(ks[10], (K,), jnp.float32)
    raw_beta = jax.random.normal(ks[11], (K,), jnp.float32)
    alpha = jax.nn.softplus(raw_alpha) + 1e-3
    beta = -alpha + jax.nn.softplus(raw_beta)       # guarantees invertible radial flow
    ab = jnp.stack([alpha, beta], axis=1).astype(jnp.float32)  # (K, 2)

    params = (w1, b1, w2, b2, wloc, bloc, wlogp, blogp, z0, ab)

    post_stats, post_log_ev, log_prob = natpn_forward(x, params)
    jax.block_until_ready((post_stats, post_log_ev, log_prob))

    ref_stats, ref_log_ev, ref_log_prob = natpn_reference(x, params)
    np.testing.assert_allclose(np.asarray(log_prob), np.asarray(ref_log_prob),
                               rtol=1e-3, atol=1e-3)
    np.testing.assert_allclose(np.asarray(post_log_ev), np.asarray(ref_log_ev),
                               rtol=1e-3, atol=1e-3)
    np.testing.assert_allclose(np.asarray(post_stats), np.asarray(ref_stats),
                               rtol=1e-3, atol=1e-3)

    print("KERNEL_OK")
</pallas_src>

<mosaic_0001>
module attributes {stable_mosaic.version = 11 : i64} {
  func.func @natpn_kernel(%arg0: memref<8x16xf32, #tpu.memory_space<vmem>>, %arg1: memref<16x32xf32, #tpu.memory_space<vmem>>, %arg2: memref<32x16xf32, #tpu.memory_space<vmem>>, %arg3: memref<16x9xf32, #tpu.memory_space<vmem>>, %arg4: memref<6x32xf32, #tpu.memory_space<vmem>>, %arg5: memref<8x12xf32, #tpu.memory_space<vmem>>) attributes {dimension_semantics = [], scalar_prefetch = 0 : i64, scratch_operands = 0 : i64, tpu.core_type = #tpu.core_type<tc>} {
    %c0 = arith.constant 0 : index
    %c0_0 = arith.constant 0 : index
    %0 = vector.load %arg4[%c0, %c0_0] : memref<6x32xf32, #tpu.memory_space<vmem>>, vector<1x32xf32>
    %c1 = arith.constant 1 : index
    %c0_1 = arith.constant 0 : index
    %1 = vector.load %arg4[%c1, %c0_1] : memref<6x32xf32, #tpu.memory_space<vmem>>, vector<1x16xf32>
    %c2 = arith.constant 2 : index
    %c0_2 = arith.constant 0 : index
    %2 = vector.load %arg4[%c2, %c0_2] : memref<6x32xf32, #tpu.memory_space<vmem>>, vector<1x9xf32>
    %c3 = arith.constant 3 : index
    %c0_3 = arith.constant 0 : index
    %3 = vector.load %arg4[%c3, %c0_3] : memref<6x32xf32, #tpu.memory_space<vmem>>, vector<1x3xf32>
    %c4 = arith.constant 4 : index
    %c0_4 = arith.constant 0 : index
    %4 = vector.load %arg4[%c4, %c0_4] : memref<6x32xf32, #tpu.memory_space<vmem>>, vector<1x3xf32>
    %c5 = arith.constant 5 : index
    %c0_5 = arith.constant 0 : index
    %5 = vector.load %arg4[%c5, %c0_5] : memref<6x32xf32, #tpu.memory_space<vmem>>, vector<1x3xf32>
    %c0_6 = arith.constant 0 : index
    %c0_7 = arith.constant 0 : index
    %6 = vector.load %arg0[%c0_6, %c0_7] : memref<8x16xf32, #tpu.memory_space<vmem>>, vector<8x16xf32>
    %c0_8 = arith.constant 0 : index
    %c0_9 = arith.constant 0 : index
    %7 = vector.load %arg1[%c0_8, %c0_9] : memref<16x32xf32, #tpu.memory_space<vmem>>, vector<16x32xf32>
    %cst = arith.constant dense<0.000000e+00> : vector<8x32xf32>
    %8 = tpu.matmul %6, %7, %cst {dimension_numbers = #tpu.dot_dimension_numbers<[1], [0], [0], [1], [0, 0, 1, 1], [], []>} : vector<8x16xf32>, vector<16x32xf32>, vector<8x32xf32> -> vector<8x32xf32>
    %9 = vector.broadcast %0 : vector<1x32xf32> to vector<8x32xf32>
    %10 = arith.addf %8, %9 : vector<8x32xf32>
    %cst_10 = arith.constant 0.000000e+00 : f32
    %11 = vector.broadcast %cst_10 : f32 to vector<8x32xf32>
    %12 = arith.maximumf %10, %11 : vector<8x32xf32>
    %c0_11 = arith.constant 0 : index
    %c0_12 = arith.constant 0 : index
    %13 = vector.load %arg2[%c0_11, %c0_12] : memref<32x16xf32, #tpu.memory_space<vmem>>, vector<32x16xf32>
    %cst_13 = arith.constant dense<0.000000e+00> : vector<8x16xf32>
    %14 = tpu.matmul %12, %13, %cst_13 {dimension_numbers = #tpu.dot_dimension_numbers<[1], [0], [0], [1], [0, 0, 1, 1], [], []>} : vector<8x32xf32>, vector<32x16xf32>, vector<8x16xf32> -> vector<8x16xf32>
    %15 = vector.broadcast %1 : vector<1x16xf32> to vector<8x16xf32>
    %16 = arith.addf %14, %15 : vector<8x16xf32>
    %c0_14 = arith.constant 0 : index
    %c0_15 = arith.constant 0 : index
    %17 = vector.load %arg3[%c0_14, %c0_15] : memref<16x9xf32, #tpu.memory_space<vmem>>, vector<16x9xf32>
    %cst_16 = arith.constant dense<0.000000e+00> : vector<8x9xf32>
    %18 = tpu.matmul %16, %17, %cst_16 {dimension_numbers = #tpu.dot_dimension_numbers<[1], [0], [0], [1], [0, 0, 1, 1], [], []>} : vector<8x16xf32>, vector<16x9xf32>, vector<8x9xf32> -> vector<8x9xf32>
    %19 = vector.broadcast %2 : vector<1x9xf32> to vector<8x9xf32>
    %20 = arith.addf %18, %19 : vector<8x9xf32>
    %21 = vector.extract_strided_slice %20 {offsets = [0, 0], sizes = [8, 3], strides = [1, 1]} : vector<8x9xf32> to vector<8x3xf32>
    %22 = vector.extract_strided_slice %20 {offsets = [0, 3], sizes = [8, 3], strides = [1, 1]} : vector<8x9xf32> to vector<8x3xf32>
    %23 = vector.extract_strided_slice %20 {offsets = [0, 6], sizes = [8, 3], strides = [1, 1]} : vector<8x9xf32> to vector<8x3xf32>
    %24 = arith.mulf %21, %21 : vector<8x3xf32>
    %cst_17 = arith.constant 0.000000e+00 : f32
    %25 = vector.broadcast %cst_17 : f32 to vector<8x3xf32>
    %26 = arith.subf %25, %22 : vector<8x3xf32>
    %27 = math.exp %26 : vector<8x3xf32>
    %28 = arith.addf %24, %27 : vector<8x3xf32>
    %29 = arith.mulf %16, %16 : vector<8x16xf32>
    %cst_18 = arith.constant dense<0.000000e+00> : vector<8xf32>
    %30 = vector.multi_reduction <add>, %29, %cst_18 [1] : vector<8x16xf32> to vector<8xf32>
    %31 = vector.shape_cast %30 : vector<8xf32> to vector<8x1xf32>
    %cst_19 = arith.constant 2.000000e+00 : f32
    %32 = vector.broadcast %cst_19 : f32 to vector<8x3xf32>
    %33 = arith.mulf %32, %23 : vector<8x3xf32>
    %34 = vector.broadcast %31 : vector<8x1xf32> to vector<8x3xf32>
    %35 = arith.subf %34, %33 : vector<8x3xf32>
    %36 = vector.broadcast %5 : vector<1x3xf32> to vector<8x3xf32>
    %37 = arith.addf %35, %36 : vector<8x3xf32>
    %cst_20 = arith.constant 0.000000e+00 : f32
    %38 = vector.broadcast %cst_20 : f32 to vector<8x3xf32>
    %39 = arith.maximumf %37, %38 : vector<8x3xf32>
    %cst_21 = arith.constant 9.99999996E-13 : f32
    %40 = vector.broadcast %cst_21 : f32 to vector<8x3xf32>
    %41 = arith.addf %39, %40 : vector<8x3xf32>
    %42 = math.sqrt %41 : vector<8x3xf32>
    %43 = vector.broadcast %3 : vector<1x3xf32> to vector<8x3xf32>
    %44 = arith.addf %43, %42 : vector<8x3xf32>
    %cst_22 = arith.constant 1.000000e+00 : f32
    %45 = vector.broadcast %cst_22 : f32 to vector<8x3xf32>
    %46 = arith.divf %45, %44 : vector<8x3xf32>
    %47 = vector.broadcast %4 : vector<1x3xf32> to vector<8x3xf32>
    %48 = arith.mulf %47, %46 : vector<8x3xf32>
    %cst_23 = arith.constant 2.000000e+00 : f32
    %49 = vector.broadcast %cst_23 : f32 to vector<8x3xf32>
    %50 = arith.mulf %49, %48 : vector<8x3xf32>
    %51 = vector.broadcast %31 : vector<8x1xf32> to vector<8x3xf32>
    %52 = arith.subf %51, %23 : vector<8x3xf32>
    %53 = arith.mulf %50, %52 : vector<8x3xf32>
    %54 = vector.broadcast %31 : vector<8x1xf32> to vector<8x3xf32>
    %55 = arith.addf %54, %53 : vector<8x3xf32>
    %56 = arith.mulf %48, %48 : vector<8x3xf32>
    %57 = arith.mulf %56, %39 : vector<8x3xf32>
    %58 = arith.addf %55, %57 : vector<8x3xf32>
    %59 = math.log1p %48 : vector<8x3xf32>
    %cst_24 = arith.constant 1.500000e+01 : f32
    %60 = vector.broadcast %cst_24 : f32 to vector<8x3xf32>
    %61 = arith.mulf %60, %59 : vector<8x3xf32>
    %62 = vector.broadcast %4 : vector<1x3xf32> to vector<8x3xf32>
    %63 = arith.mulf %62, %42 : vector<8x3xf32>
    %64 = arith.mulf %63, %46 : vector<8x3xf32>
    %65 = arith.mulf %64, %46 : vector<8x3xf32>
    %66 = arith.subf %48, %65 : vector<8x3xf32>
    %67 = math.log1p %66 : vector<8x3xf32>
    %68 = arith.addf %61, %67 : vector<8x3xf32>
    %cst_25 = arith.constant -5.000000e-01 : f32
    %69 = vector.broadcast %cst_25 : f32 to vector<8x3xf32>
    %70 = arith.mulf %69, %58 : vector<8x3xf32>
    %cst_26 = arith.constant 14.7030163 : f32
    %71 = vector.broadcast %cst_26 : f32 to vector<8x3xf32>
    %72 = arith.subf %70, %71 : vector<8x3xf32>
    %73 = arith.addf %72, %68 : vector<8x3xf32>
    %cst_27 = arith.constant 20.2481937 : f32
    %74 = vector.broadcast %cst_27 : f32 to vector<8x3xf32>
    %75 = arith.addf %73, %74 : vector<8x3xf32>
    %cst_28 = arith.constant 0.000000e+00 : f32
    %76 = vector.broadcast %cst_28 : f32 to vector<8x3xf32>
    %77 = arith.subf %75, %76 : vector<8x3xf32>
    %cst_29 = arith.constant 0.000000e+00 : f32
    %78 = vector.broadcast %cst_29 : f32 to vector<8x3xf32>
    %79 = arith.subf %78, %77 : vector<8x3xf32>
    %80 = math.exp %79 : vector<8x3xf32>
    %cst_30 = arith.constant 1.000000e+00 : f32
    %81 = vector.broadcast %cst_30 : f32 to vector<8x3xf32>
    %82 = arith.addf %81, %80 : vector<8x3xf32>
    %cst_31 = arith.constant 1.000000e+00 : f32
    %83 = vector.broadcast %cst_31 : f32 to vector<8x3xf32>
    %84 = arith.divf %83, %82 : vector<8x3xf32>
    %85 = math.exp %77 : vector<8x3xf32>
    %cst_32 = arith.constant 1.000000e+00 : f32
    %86 = vector.broadcast %cst_32 : f32 to vector<8x3xf32>
    %87 = arith.addf %86, %85 : vector<8x3xf32>
    %cst_33 = arith.constant 1.000000e+00 : f32
    %88 = vector.broadcast %cst_33 : f32 to vector<8x3xf32>
    %89 = arith.divf %88, %87 : vector<8x3xf32>
    %cst_34 = arith.constant 0.000000e+00 : f32
    %90 = vector.broadcast %cst_34 : f32 to vector<8x3xf32>
    %91 = arith.maximumf %77, %90 : vector<8x3xf32>
    %cst_35 = arith.constant 0.000000e+00 : f32
    %92 = vector.broadcast %cst_35 : f32 to vector<8x3xf32>
    %93 = arith.addf %92, %91 : vector<8x3xf32>
    %94 = math.absf %77 : vector<8x3xf32>
    %cst_36 = arith.constant 0.000000e+00 : f32
    %95 = vector.broadcast %cst_36 : f32 to vector<8x3xf32>
    %96 = arith.subf %95, %94 : vector<8x3xf32>
    %97 = math.exp %96 : vector<8x3xf32>
    %98 = math.log1p %97 : vector<8x3xf32>
    %99 = arith.addf %93, %98 : vector<8x3xf32>
    %cst_37 = arith.constant 0.000000e+00 : f32
    %100 = vector.broadcast %cst_37 : f32 to vector<8x3xf32>
    %101 = arith.mulf %100, %89 : vector<8x3xf32>
    %102 = arith.mulf %21, %84 : vector<8x3xf32>
    %103 = arith.addf %101, %102 : vector<8x3xf32>
    %c0_38 = arith.constant 0 : index
    %c0_39 = arith.constant 0 : index
    %104 = vector.load %arg5[%c0_38, %c0_39] : memref<8x12xf32, #tpu.memory_space<vmem>>, vector<8x3xf32>
    tpu.vector_store %arg5[%c0_38, %c0_39], %103 {strides = array<i32>} : memref<8x12xf32, #tpu.memory_space<vmem>>, vector<8x3xf32>,
    %cst_40 = arith.constant 1.000000e+00 : f32
    %105 = vector.broadcast %cst_40 : f32 to vector<8x3xf32>
    %106 = arith.mulf %105, %89 : vector<8x3xf32>
    %107 = arith.mulf %28, %84 : vector<8x3xf32>
    %108 = arith.addf %106, %107 : vector<8x3xf32>
    %c0_41 = arith.constant 0 : index
    %c3_42 = arith.constant 3 : index
    %109 = vector.load %arg5[%c0_41, %c3_42] : memref<8x12xf32, #tpu.memory_space<vmem>>, vector<8x3xf32>
    tpu.vector_store %arg5[%c0_41, %c3_42], %108 {strides = array<i32>} : memref<8x12xf32, #tpu.memory_space<vmem>>, vector<8x3xf32>,
    %c0_43 = arith.constant 0 : index
    %c6 = arith.constant 6 : index
    %110 = vector.load %arg5[%c0_43, %c6] : memref<8x12xf32, #tpu.memory_space<vmem>>, vector<8x3xf32>
    tpu.vector_store %arg5[%c0_43, %c6], %99 {strides = array<i32>} : memref<8x12xf32, #tpu.memory_space<vmem>>, vector<8x3xf32>,
    %c0_44 = arith.constant 0 : index
    %c9 = arith.constant 9 : index
    %111 = vector.load %arg5[%c0_44, %c9] : memref<8x12xf32, #tpu.memory_space<vmem>>, vector<8x3xf32>
    tpu.vector_store %arg5[%c0_44, %c9], %73 {strides = array<i32>} : memref<8x12xf32, #tpu.memory_space<vmem>>, vector<8x3xf32>,
    return
  }
}

</mosaic_0001>

<llo_original>
// kernel: natpn_forward.1
$region0: #{natpn_forward.1}
  #allocation0 [shape = 'u32[]', space=smem, size = 0x4, offset = 0x4, fixed_abs, tag = 'smem constant byte address 0x4 - core index']
  #allocation1 [shape = 'u32[144,128]{1,0:T(1,128)}', space=vmem, size = 0x12000, scoped, tag = 'internal scratch']
  %s0 = inlined_call_operand.vmem [shape: f32[8,16], index: 0, kind: input, shape index: {}]
  %s1 = inlined_call_operand.vmem [shape: f32[16,32], index: 1, kind: input, shape index: {}]
  %s2 = inlined_call_operand.vmem [shape: f32[32,16], index: 2, kind: input, shape index: {}]
  %s3 = inlined_call_operand.vmem [shape: f32[16,9], index: 3, kind: input, shape index: {}]
  %s4 = inlined_call_operand.vmem [shape: f32[6,32], index: 4, kind: input, shape index: {}]
  %s5 = inlined_call_operand.vmem [shape: f32[8,12], index: 5, kind: output, shape index: {}]
  %s6 = sld [smem:[#allocation0]]
  $region30: #{natpn_forward.1} parent=0
    _
  %s8 = ssub.s32 1, %s6
  %s9 = scalar_select 0, %s8, %s6
  // Predicated region
  $region2: #{natpn_forward.1} parent=0 // pred_check
    _
  $region3: #{natpn_forward.1} parent=0 // pred_check_branch
    %11 = sbr.rel (0) target = $region5
  $region4: #{natpn_forward.1} parent=0 // pred_region
    _
  $region5: #{natpn_forward.1} parent=0 // pred_fallthru
    _
  // Predicated region
  $region6: #{natpn_forward.1} parent=0 // pred_check
    _
  $region7: #{natpn_forward.1} parent=0 // pred_check_branch
    %13 = sbr.rel (0) target = $region9
  $region8: #{natpn_forward.1} parent=0 // pred_region
    _
  $region9: #{natpn_forward.1} parent=0 // pred_fallthru
    _
  // Predicated region
  $region10: #{natpn_forward.1} parent=0 // pred_check
    _
  $region11: #{natpn_forward.1} parent=0 // pred_check_branch
    %15 = sbr.rel (0) target = $region13
  $region12: #{natpn_forward.1} parent=0 // pred_region
    _
  $region13: #{natpn_forward.1} parent=0 // pred_fallthru
    _
  // Predicated region
  $region14: #{natpn_forward.1} parent=0 // pred_check
    _
  $region15: #{natpn_forward.1} parent=0 // pred_check_branch
    %17 = sbr.rel (0) target = $region17
  $region16: #{natpn_forward.1} parent=0 // pred_region
    _
  $region17: #{natpn_forward.1} parent=0 // pred_fallthru
    _
  // Predicated region
  $region18: #{natpn_forward.1} parent=0 // pred_check
    _
  $region19: #{natpn_forward.1} parent=0 // pred_check_branch
    %19 = sbr.rel (0) target = $region21
  $region20: #{natpn_forward.1} parent=0 // pred_region
    _
  $region21: #{natpn_forward.1} parent=0 // pred_fallthru
    _
  %v20 = vld [vmem:[%s4] sm:$0x1]
  %v21 = vld [vmem:[%s4 + $0x1] sm:$0x1]
  %v22 = vld [vmem:[%s4 + $0x2] sm:$0x1]
  %v23 = vld [vmem:[%s4 + $0x3] sm:$0x1]
  %v24 = vld [vmem:[%s4 + $0x4] sm:$0x1]
  %v25 = vld [vmem:[%s4 + $0x5] sm:$0x1]
  %v26 = vld [vmem:[%s0] sm:$0xff]
  %v27 = vld [vmem:[%s1] sm:$0xff]
  %v28 = vld [vmem:[%s1 + $0x8] sm:$0xff]
  %v29 = vlaneseq
  %v30 = vshrl.u32 %v29, 7
  %v31 = vsub.s32 0, %v30
  %v32 = vrot.slane %v20, %v31
  %vm33 = vcmask 130048
  %v35 = vsel %vm33, %v26, 0
  %37 = vmatprep.subr.mxu0 0.0
  %38 = vmatpush1.msra.mxu0 0.0
  %39 = vmatprep.subr.mxu0 0.0
  %40 = vmatpush1.msra.mxu0 0.0
  %41 = vmatprep.subr.mxu0 0.0
  %42 = vmatpush1.msra.mxu0 0.0
  %43 = vmatprep.subr.mxu0 0.0
  %44 = vmatpush1.msra.mxu0 0.0
  %45 = vmatprep.subr.mxu0 0.0
  %46 = vmatpush1.msra.mxu0 0.0
  %47 = vmatprep.subr.mxu0 0.0
  %48 = vmatpush1.msra.mxu0 0.0
  %49 = vmatprep.subr.mxu0 0.0
  %50 = vmatpush1.msra.mxu0 0.0
  %51 = vmatprep.subr.mxu0 0.0
  %52 = vmatpush1.msra.mxu0 0.0
  %53 = vmatprep.subr.mxu0 0.0
  %54 = vmatpush1.msra.mxu0 0.0
  %55 = vmatprep.subr.mxu0 0.0
  %56 = vmatpush1.msra.mxu0 0.0
  %57 = vmatprep.subr.mxu0 0.0
  %58 = vmatpush1.msra.mxu0 0.0
  %59 = vmatprep.subr.mxu0 0.0
  %60 = vmatpush1.msra.mxu0 0.0
  %61 = vmatprep.subr.mxu0 0.0
  %62 = vmatpush1.msra.mxu0 0.0
  %63 = vmatprep.subr.mxu0 0.0
  %64 = vmatpush1.msra.mxu0 0.0
  %65 = vmatprep.subr.mxu0 0.0
  %66 = vmatpush1.msra.mxu0 %v28
  %67 = vmatprep.subr.mxu0 0.0
  %68 = vmatpush1.msra.mxu0 %v27
  %69 = vmatprep.subr.mxu0 0.0
  %70 = vmatpush2.msra.mxu0 0.0
  %71 = vmatprep.subr.mxu0 0.0
  %72 = vmatpush2.msra.mxu0 0.0
  %73 = vmatprep.subr.mxu0 0.0
  %74 = vmatpush2.msra.mxu0 0.0
  %75 = vmatprep.subr.mxu0 0.0
  %76 = vmatpush2.msra.mxu0 0.0
  %77 = vmatprep.subr.mxu0 0.0
  %78 = vmatpush2.msra.mxu0 0.0
  %79 = vmatprep.subr.mxu0 0.0
  %80 = vmatpush2.msra.mxu0 0.0
  %81 = vmatprep.subr.mxu0 0.0
  %82 = vmatpush2.msra.mxu0 0.0
  %83 = vmatprep.subr.mxu0 0.0
  %84 = vmatpush2.msra.mxu0 0.0
  %85 = vmatprep.subr.mxu0 0.0
  %86 = vmatpush2.msra.mxu0 0.0
  %87 = vmatprep.subr.mxu0 0.0
  %88 = vmatpush2.msra.mxu0 0.0
  %89 = vmatprep.subr.mxu0 0.0
  %90 = vmatpush2.msra.mxu0 0.0
  %91 = vmatprep.subr.mxu0 0.0
  %92 = vmatpush2.msra.mxu0 0.0
  %93 = vmatprep.subr.mxu0 0.0
  %94 = vmatpush2.msra.mxu0 0.0
  %95 = vmatprep.subr.mxu0 0.0
  %96 = vmatpush2.msra.mxu0 0.0
  %97 = vmatprep.subr.mxu0 0.0
  %98 = vmatpush2.msra.mxu0 0.0
  %99 = vmatprep.subr.mxu0 0.0
  %100 = vmatpush2.msra.mxu0 0.0
  %101 = vmatprep.mubr.f32.mxu0 0.0
  %102 = vmatmul.mubr.f32.gmra.mxu0 %v35
  %v103 = vpop.f32.mrf.mxu0
  %v104 = vadd.f32 %v32, %v103
  %v105 = vpop.f32.mrf.mxu0
  %106 = vdwg.mxu0
  %v107 = vmax.f32 %v104, 0.0
  %v108 = vld [vmem:[%s2] sm:$0xff]
  %v109 = vld [vmem:[%s2 + $0x8] sm:$0xff]
  %v110 = vld [vmem:[%s2 + $0x10] sm:$0xff]
  %v111 = vld [vmem:[%s2 + $0x18] sm:$0xff]
  %v112 = vlaneseq
  %v113 = vshrl.u32 %v112, 7
  %v114 = vsub.s32 0, %v113
  %v115 = vrot.slane %v21, %v114
  %vm116 = vcmask 261120
  %v118 = vsel %vm116, %v107, 0
  %120 = vmatprep.subr.mxu0 0.0
  %121 = vmatpush1.msra.mxu0 0.0
  %122 = vmatprep.subr.mxu0 0.0
  %123 = vmatpush1.msra.mxu0 0.0
  %124 = vmatprep.subr.mxu0 0.0
  %125 = vmatpush1.msra.mxu0 0.0
  %126 = vmatprep.subr.mxu0 0.0
  %127 = vmatpush1.msra.mxu0 0.0
  %128 = vmatprep.subr.mxu0 0.0
  %129 = vmatpush1.msra.mxu0 0.0
  %130 = vmatprep.subr.mxu0 0.0
  %131 = vmatpush1.msra.mxu0 0.0
  %132 = vmatprep.subr.mxu0 0.0
  %133 = vmatpush1.msra.mxu0 0.0
  %134 = vmatprep.subr.mxu0 0.0
  %135 = vmatpush1.msra.mxu0 0.0
  %136 = vmatprep.subr.mxu0 0.0
  %137 = vmatpush1.msra.mxu0 0.0
  %138 = vmatprep.subr.mxu0 0.0
  %139 = vmatpush1.msra.mxu0 0.0
  %140 = vmatprep.subr.mxu0 0.0
  %141 = vmatpush1.msra.mxu0 0.0
  %142 = vmatprep.subr.mxu0 0.0
  %143 = vmatpush1.msra.mxu0 0.0
  %144 = vmatprep.subr.mxu0 0.0
  %145 = vmatpush1.msra.mxu0 %v111
  %146 = vmatprep.subr.mxu0 0.0
  %147 = vmatpush1.msra.mxu0 %v110
  %148 = vmatprep.subr.mxu0 0.0
  %149 = vmatpush1.msra.mxu0 %v109
  %150 = vmatprep.subr.mxu0 0.0
  %151 = vmatpush1.msra.mxu0 %v108
  %152 = vmatprep.subr.mxu0 0.0
  %153 = vmatpush2.msra.mxu0 0.0
  %154 = vmatprep.subr.mxu0 0.0
  %155 = vmatpush2.msra.mxu0 0.0
  %156 = vmatprep.subr.mxu0 0.0
  %157 = vmatpush2.msra.mxu0 0.0
  %158 = vmatprep.subr.mxu0 0.0
  %159 = vmatpush2.msra.mxu0 0.0
  %160 = vmatprep.subr.mxu0 0.0
  %161 = vmatpush2.msra.mxu0 0.0
  %162 = vmatprep.subr.mxu0 0.0
  %163 = vmatpush2.msra.mxu0 0.0
  %164 = vmatprep.subr.mxu0 0.0
  %165 = vmatpush2.msra.mxu0 0.0
  %166 = vmatprep.subr.mxu0 0.0
  %167 = vmatpush2.msra.mxu0 0.0
  %168 = vmatprep.subr.mxu0 0.0
  %169 = vmatpush2.msra.mxu0 0.0
  %170 = vmatprep.subr.mxu0 0.0
  %171 = vmatpush2.msra.mxu0 0.0
  %172 = vmatprep.subr.mxu0 0.0
  %173 = vmatpush2.msra.mxu0 0.0
  %174 = vmatprep.subr.mxu0 0.0
  %175 = vmatpush2.msra.mxu0 0.0
  %176 = vmatprep.subr.mxu0 0.0
  %177 = vmatpush2.msra.mxu0 0.0
  %178 = vmatprep.subr.mxu0 0.0
  %179 = vmatpush2.msra.mxu0 0.0
  %180 = vmatprep.subr.mxu0 0.0
  %181 = vmatpush2.msra.mxu0 0.0
  %182 = vmatprep.subr.mxu0 0.0
  %183 = vmatpush2.msra.mxu0 0.0
  %184 = vmatprep.mubr.f32.mxu0 0.0
  %185 = vmatmul.mubr.f32.gmra.mxu0 %v118
  %v186 = vpop.f32.mrf.mxu0
  %v187 = vadd.f32 %v115, %v186
  %v188 = vpop.f32.mrf.mxu0
  %189 = vdwg.mxu0
  %v190 = vld [vmem:[%s3] sm:$0xff]
  %v191 = vld [vmem:[%s3 + $0x8] sm:$0xff]
  %v192 = vlaneseq
  %v193 = vshrl.u32 %v192, 7
  %v194 = vsub.s32 0, %v193
  %v195 = vrot.slane %v22, %v194
  %v197 = vsel %vm33, %v187, 0
  %199 = vmatprep.subr.mxu0 0.0
  %200 = vmatpush1.msra.mxu0 0.0
  %201 = vmatprep.subr.mxu0 0.0
  %202 = vmatpush1.msra.mxu0 0.0
  %203 = vmatprep.subr.mxu0 0.0
  %204 = vmatpush1.msra.mxu0 0.0
  %205 = vmatprep.subr.mxu0 0.0
  %206 = vmatpush1.msra.mxu0 0.0
  %207 = vmatprep.subr.mxu0 0.0
  %208 = vmatpush1.msra.mxu0 0.0
  %209 = vmatprep.subr.mxu0 0.0
  %210 = vmatpush1.msra.mxu0 0.0
  %211 = vmatprep.subr.mxu0 0.0
  %212 = vmatpush1.msra.mxu0 0.0
  %213 = vmatprep.subr.mxu0 0.0
  %214 = vmatpush1.msra.mxu0 0.0
  %215 = vmatprep.subr.mxu0 0.0
  %216 = vmatpush1.msra.mxu0 0.0
  %217 = vmatprep.subr.mxu0 0.0
  %218 = vmatpush1.msra.mxu0 0.0
  %219 = vmatprep.subr.mxu0 0.0
  %220 = vmatpush1.msra.mxu0 0.0
  %221 = vmatprep.subr.mxu0 0.0
  %222 = vmatpush1.msra.mxu0 0.0
  %223 = vmatprep.subr.mxu0 0.0
  %224 = vmatpush1.msra.mxu0 0.0
  %225 = vmatprep.subr.mxu0 0.0
  %226 = vmatpush1.msra.mxu0 0.0
  %227 = vmatprep.subr.mxu0 0.0
  %228 = vmatpush1.msra.mxu0 %v191
  %229 = vmatprep.subr.mxu0 0.0
  %230 = vmatpush1.msra.mxu0 %v190
  %231 = vmatprep.subr.mxu0 0.0
  %232 = vmatpush2.msra.mxu0 0.0
  %233 = vmatprep.subr.mxu0 0.0
  %234 = vmatpush2.msra.mxu0 0.0
  %235 = vmatprep.subr.mxu0 0.0
  %236 = vmatpush2.msra.mxu0 0.0
  %237 = vmatprep.subr.mxu0 0.0
  %238 = vmatpush2.msra.mxu0 0.0
  %239 = vmatprep.subr.mxu0 0.0
  %240 = vmatpush2.msra.mxu0 0.0
  %241 = vmatprep.subr.mxu0 0.0
  %242 = vmatpush2.msra.mxu0 0.0
  %243 = vmatprep.subr.mxu0 0.0
  %244 = vmatpush2.msra.mxu0 0.0
  %245 = vmatprep.subr.mxu0 0.0
  %246 = vmatpush2.msra.mxu0 0.0
  %247 = vmatprep.subr.mxu0 0.0
  %248 = vmatpush2.msra.mxu0 0.0
  %249 = vmatprep.subr.mxu0 0.0
  %250 = vmatpush2.msra.mxu0 0.0
  %251 = vmatprep.subr.mxu0 0.0
  %252 = vmatpush2.msra.mxu0 0.0
  %253 = vmatprep.subr.mxu0 0.0
  %254 = vmatpush2.msra.mxu0 0.0
  %255 = vmatprep.subr.mxu0 0.0
  %256 = vmatpush2.msra.mxu0 0.0
  %257 = vmatprep.subr.mxu0 0.0
  %258 = vmatpush2.msra.mxu0 0.0
  %259 = vmatprep.subr.mxu0 0.0
  %260 = vmatpush2.msra.mxu0 0.0
  %261 = vmatprep.subr.mxu0 0.0
  %262 = vmatpush2.msra.mxu0 0.0
  %263 = vmatprep.mubr.f32.mxu0 0.0
  %264 = vmatmul.mubr.f32.gmra.mxu0 %v197
  %v265 = vpop.f32.mrf.mxu0
  %v266 = vadd.f32 %v195, %v265
  %v267 = vpop.f32.mrf.mxu0
  %268 = vdwg.mxu0
  %v269 = vmul.f32 %v266, %v266
  %v270 = vsub.f32 0.0, %v266
  %v271 = vmul.f32 %v270, 1.442695
  %v272 = vpow.pop %v271
  %274 = vrot.lane.b32.xlu0 %v272, 125
  %v275 = vpop.permute.xlu0 %274
  %v277 = vadd.f32 %v269, %v275
  %v278 = vmul.f32 %v187, %v187
  %v279 = vsel %vm33, %v278, 0.0
  %280 = vadd.xlane.f32.xlu0 %v279
  %v281 = vpop.xlane.xlu0 %280
  %v282 = vmul.f32 %v266, 2.0
  %v283 = vsub.f32 %v281, %v282
  %v284 = vlaneseq
  %v285 = vshrl.u32 %v284, 7
  %v286 = vsub.s32 0, %v285
  %v287 = vrot.slane %v25, %v286
  %289 = vrot.lane.b32.xlu0 %v287, 6
  %v290 = vpop.permute.xlu0 %289
  %v292 = vadd.f32 %v283, %v290
  %v293 = vmax.f32 %v292, 0.0
  %v294 = vadd.f32 %v293, 1e-12
  %v295 = vrsqrt.pop %v294
  %v296 = vmul.f32 %v294, %v295
  %vm297 = vcmp.eq.f32.partialorder %v294, inf
  %v298 = vsel %vm297, %v294, %v296
  %vm299 = vcmp.eq.f32.partialorder %v294, 0.0
  %v300 = vand.u32 %v294, 2147483648
  %v301 = vsel %vm299, %v300, %v298
  %v302 = vlaneseq
  %v303 = vshrl.u32 %v302, 7
  %v304 = vsub.s32 0, %v303
  %v305 = vrot.slane %v23, %v304
  %307 = vrot.lane.b32.xlu0 %v301, 122
  %v308 = vpop.permute.xlu0 %307
  %v310 = vadd.f32 %v305, %v308
  %v311 = vrcp.pop %v310
  %v312 = vmul.f32 1.0, %v311
  %v313 = vlaneseq
  %v314 = vshrl.u32 %v313, 7
  %v315 = vsub.s32 0, %v314
  %v316 = vrot.slane %v24, %v315
  %v317 = vmul.f32 %v316, %v312
  %v318 = vmul.f32 %v317, 2.0
  %v319 = vsub.f32 %v281, %v266
  %321 = vrot.lane.b32.xlu0 %v319, 122
  %v322 = vpop.permute.xlu0 %321
  %v324 = vmul.f32 %v318, %v322
  %v325 = vadd.f32 %v281, %v324
  %v326 = vmul.f32 %v317, %v317
  %328 = vrot.lane.b32.xlu0 %v293, 122
  %v329 = vpop.permute.xlu0 %328
  %v331 = vmul.f32 %v326, %v329
  %v332 = vadd.f32 %v325, %v331
  %v333 = vadd.f32 %v317, 1.0
  %v334 = vlog2.pop %v333
  %v335 = vmul.f32 %v334, 0.6931472
  %v336 = vmul.f32 -0.5, %v317
  %v337 = vadd.f32 %v336, 1.0
  %v338 = vmul.f32 %v337, %v317
  %v339 = vand.u32 2147483647, %v317
  %vm340 = vcmp.lt.f32.partialorder %v339, 0.0004427343
  %v341 = vsel %vm340, %v338, %v335
  %v342 = vmul.f32 %v341, 15.0
  %v343 = vmul.f32 %v316, %v308
  %v344 = vmul.f32 %v343, %v312
  %v345 = vmul.f32 %v344, %v312
  %v346 = vsub.f32 %v317, %v345
  %v347 = vadd.f32 %v346, 1.0
  %v348 = vlog2.pop %v347
  %v349 = vmul.f32 %v348, 0.6931472
  %v350 = vmul.f32 -0.5, %v346
  %v351 = vadd.f32 %v350, 1.0
  %v352 = vmul.f32 %v351, %v346
  %v353 = vand.u32 2147483647, %v346
  %vm354 = vcmp.lt.f32.partialorder %v353, 0.0004427343
  %v355 = vsel %vm354, %v352, %v349
  %v356 = vadd.f32 %v342, %v355
  %v357 = vmul.f32 %v332, -0.5
  %v358 = vsub.f32 %v357, 14.703016
  %v359 = vadd.f32 %v358, %v356
  %v360 = vadd.f32 %v359, 20.248194
  %v361 = vsub.f32 0.0, %v360
  %v362 = vmul.f32 %v361, 1.442695
  %v363 = vpow.pop %v362
  %v364 = vadd.f32 %v363, 1.0
  %v365 = vrcp.pop %v364
  %v366 = vmul.f32 1.0, %v365
  %v367 = vmul.f32 %v360, 1.442695
  %v368 = vpow.pop %v367
  %v369 = vadd.f32 %v368, 1.0
  %v370 = vrcp.pop %v369
  %v371 = vmul.f32 1.0, %v370
  %v372 = vmax.f32 %v360, 0.0
  %v373 = vadd.f32 %v372, 0.0
  %v374 = vand.u32 2147483647, %v360
  %v375 = vsub.f32 0.0, %v374
  %v376 = vmul.f32 %v375, 1.442695
  %v377 = vpow.pop %v376
  %v378 = vadd.f32 %v377, 1.0
  %v379 = vlog2.pop %v378
  %v380 = vmul.f32 %v379, 0.6931472
  %v381 = vmul.f32 -0.5, %v377
  %v382 = vadd.f32 %v381, 1.0
  %v383 = vmul.f32 %v382, %v377
  %v384 = vand.u32 2147483647, %v377
  %vm385 = vcmp.lt.f32.partialorder %v384, 0.0004427343
  %v386 = vsel %vm385, %v383, %v380
  %v387 = vadd.f32 %v373, %v386
  %v388 = vmul.f32 %v371, 0.0
  %v389 = vmul.f32 %v266, %v366
  %v390 = vadd.f32 %v388, %v389
  %vm391 = vcmask 23552
  %392 = vst.msk [vmem:[%s5] sm:$0xff] %vm391, %v390
  %v393 = vmul.f32 %v277, %v366
  %v394 = vadd.f32 %v371, %v393
  %396 = vrot.lane.b32.xlu0 %v394, 3
  %v397 = vpop.permute.xlu0 %396
  %vm399 = vcmask 48152
  %400 = vst.msk [vmem:[%s5] sm:$0xff] %vm399, %v397
  %402 = vrot.lane.b32.xlu0 %v387, 6
  %v403 = vpop.permute.xlu0 %402
  %vm405 = vcmask 72752
  %406 = vst.msk [vmem:[%s5] sm:$0xff] %vm405, %v403
  %408 = vrot.lane.b32.xlu0 %v359, 9
  %v409 = vpop.permute.xlu0 %408
  %vm411 = vcmask 97352
  %412 = vst.msk [vmem:[%s5] sm:$0xff] %vm411, %v409
  // Predicated region
  $region22: #{natpn_forward.1} parent=0 // pred_check
    _
  $region23: #{natpn_forward.1} parent=0 // pred_check_branch
    %414 = sbr.rel (0) target = $region25
  $region24: #{natpn_forward.1} parent=0 // pred_region
    _
  $region25: #{natpn_forward.1} parent=0 // pred_fallthru
    _
  // Predicated region
  $region26: #{natpn_forward.1} parent=0 // pred_check
    _
  $region27: #{natpn_forward.1} parent=0 // pred_check_branch
    %416 = sbr.rel (0) target = $region29
  $region28: #{natpn_forward.1} parent=0 // pred_region
    _
  $region29: #{natpn_forward.1} parent=0 // pred_fallthru
    _

</llo_original>
